<compile_context>
chip_gen: v7x
topology: tpu7x:2x2x1
jax: 0.10.0
libtpu: 0.0.40
codegen_flags: <defaults>
</compile_context>

<pallas_src>
import functools

import jax
import jax.numpy as jnp
import numpy as np
from jax.experimental import pallas as pl
from jax.experimental.pallas import tpu as pltpu

SMOOTH = 1e-5

# ~4 MiB per (pred + label) tile: big enough to amortize the ~0.35 us/grid-step
# overhead even at v7x HBM speeds, small enough that double-buffered inputs stay
# far below the 32 MiB scoped VMEM limit on every generation (v7x physical: 64 MiB).
_TILE_BUDGET_BYTES = 4 * 1024 * 1024
_VMEM_LIMIT_BYTES = 32 * 1024 * 1024


def _pick_tiles(N, C, HW128, pred_itemsize):
    """Pick (Nb, R): Nb | N samples per block and R rows (of 128 px) per block.

    R is either HW128 (full spatial extent) or a multiple of 8 dividing HW128.
    Nb is capped at N//2 so the parallel batch grid axis has >= 2 steps
    (megacore sharding on v7x).
    """
    bytes_per_row = 128 * (C * pred_itemsize + 1)        # pred + int8 label
    nb_cap = N if N < 2 else max(1, N // 2)
    for nb in range(nb_cap, 0, -1):
        if N % nb == 0 and nb * HW128 * bytes_per_row <= _TILE_BUDGET_BYTES:
            return nb, HW128
    # A single sample's full-HW slab is too big -> tile the row axis.
    if HW128 % 8 == 0:
        for r in range(HW128, 0, -8):
            if HW128 % r == 0 and r * bytes_per_row <= _TILE_BUDGET_BYTES:
                return 1, r
        return 1, 8
    # TODO(synk): HW128 not a multiple of 8 and over budget -> one big block.
    return 1, HW128


def _dice_stats_kernel(pred_ref, tgt_ref, stats_ref,
                       inter_sc, psum_sc, tsum_sc, *, num_classes, mask_invalid):
    """Accumulate per-(sample, class) dice statistics across HW tiles.

    pred_ref : (Nb, C, R, 128) logits (native dtype; cast to f32 in-kernel)
    tgt_ref  : (Nb, 1, R, 128) int8/int32 labels (-1 marks padded pixels)
    stats_ref: (Nb, 3*C) f32 output, resident across the HW grid axis:
               [:, 0:C]   sum softmax(pred)[c] * [tgt == c]   (intersection)
               [:, C:2C]  sum softmax(pred)[c]                (pred mass)
               [:, 2C:3C] sum [tgt == c]                      (target count)
    *_sc     : (Nb, C, 128) f32 lane-wide partial accumulators (VMEM scratch).
    """
    C = num_classes
    hw = pl.program_id(1)

    @pl.when(hw == 0)
    def _():
        inter_sc[...] = jnp.zeros_like(inter_sc)
        psum_sc[...] = jnp.zeros_like(psum_sc)
        tsum_sc[...] = jnp.zeros_like(tsum_sc)

    x = pred_ref[...].astype(jnp.float32)                  # (Nb, C, R, 128)
    x_max = jnp.max(x, axis=1, keepdims=True)              # softmax over C (VPU)
    e = jnp.exp(x - x_max)
    z = jnp.sum(e, axis=1, keepdims=True)                  # (Nb, 1, R, 128)
    p = e * pl.reciprocal(z, approx=False)                 # exact: 1e-6 tolerance

    t = tgt_ref[...].astype(jnp.int32)                     # (Nb, 1, R, 128)
    cls = jax.lax.broadcasted_iota(jnp.int32, p.shape, 1)  # class id per C-plane
    is_c = t == cls                                        # (Nb, C, R, 128) bool

    inter = jnp.where(is_c, p, 0.0)                        # fused onehot * p
    onehot = jnp.where(is_c, 1.0, 0.0)
    if mask_invalid:
        p = jnp.where(t >= 0, p, 0.0)                      # drop padded pixels

    # Sublane-only reduction per step; defer cross-lane reduce to the last step.
    inter_sc[...] += jnp.sum(inter, axis=2)                # (Nb, C, 128)
    psum_sc[...] += jnp.sum(p, axis=2)
    tsum_sc[...] += jnp.sum(onehot, axis=2)

    @pl.when(hw == pl.num_programs(1) - 1)
    def _():
        stats_ref[:, 0:C] = jnp.sum(inter_sc[...], axis=-1)
        stats_ref[:, C:2 * C] = jnp.sum(psum_sc[...], axis=-1)
        stats_ref[:, 2 * C:3 * C] = jnp.sum(tsum_sc[...], axis=-1)


def dice_loss(pred, target, smooth=SMOOTH):
    """pred: (N, C, H, W) float logits; target: (N, H, W) integer labels."""
    N, C, H, W = pred.shape
    HW = H * W

    # Pad HW up to a multiple of 128 (padded pixels carry label -1 and are
    # masked out of the pred-mass sum inside the kernel).
    pad = (-HW) % 128
    mask_invalid = pad > 0
    tgt_dtype = jnp.int8 if C <= 127 else jnp.int32        # 1 B/px label stream

    pred2 = pred.reshape(N, C, HW)
    tgt2 = target.astype(tgt_dtype).reshape(N, 1, HW)
    if pad:
        pred2 = jnp.pad(pred2, ((0, 0), (0, 0), (0, pad)))
        tgt2 = jnp.pad(tgt2, ((0, 0), (0, 0), (0, pad)), constant_values=-1)
    HW128 = (HW + pad) // 128

    # Dense lane layout: last two dims (rows, 128); C is a leading axis.
    pred4 = pred2.reshape(N, C, HW128, 128)
    tgt4 = tgt2.reshape(N, 1, HW128, 128)

    Nb, R = _pick_tiles(N, C, HW128, pred4.dtype.itemsize)
    grid = (N // Nb, HW128 // R)

    stats = pl.pallas_call(
        functools.partial(_dice_stats_kernel, num_classes=C,
                          mask_invalid=mask_invalid),
        out_shape=jax.ShapeDtypeStruct((N // Nb, Nb, 3 * C), jnp.float32),
        grid_spec=pltpu.PrefetchScalarGridSpec(
            num_scalar_prefetch=0,
            grid=grid,
            in_specs=[
                pl.BlockSpec((Nb, C, R, 128), lambda nb, hw: (nb, 0, hw, 0)),
                pl.BlockSpec((Nb, 1, R, 128), lambda nb, hw: (nb, 0, hw, 0)),
            ],
            out_specs=pl.BlockSpec((None, Nb, 3 * C), lambda nb, hw: (nb, 0, 0)),
            scratch_shapes=[
                pltpu.VMEM((Nb, C, 128), jnp.float32),   # intersection partials
                pltpu.VMEM((Nb, C, 128), jnp.float32),   # pred-mass partials
                pltpu.VMEM((Nb, C, 128), jnp.float32),   # target-count partials
            ],
        ),
        compiler_params=pltpu.CompilerParams(
            dimension_semantics=("parallel", "arbitrary"),
            vmem_limit_bytes=_VMEM_LIMIT_BYTES,
        ),
    )(pred4, tgt4)

    stats = stats.reshape(N, 3 * C)
    inter = stats[:, 0:C]
    psum = stats[:, C:2 * C]
    tsum = stats[:, 2 * C:3 * C]

    # Same accumulation as the PyTorch loop over classes.
    dice = (2.0 * inter + smooth) / (psum + tsum + smooth)   # (N, C)
    return 1.0 - jnp.mean(jnp.sum(dice, axis=1)) / C


def _dice_loss_ref(pred, target, smooth=SMOOTH):
    # Pure-JAX reference matching the PyTorch module.
    p = jax.nn.softmax(pred, axis=1)
    num_classes = pred.shape[1]
    dice = 0.0
    for c in range(num_classes):
        pred_c = p[:, c]
        target_c = (target == c).astype(jnp.float32)
        intersection = jnp.sum(pred_c * target_c, axis=(1, 2))
        union = jnp.sum(pred_c, axis=(1, 2)) + jnp.sum(target_c, axis=(1, 2))
        dice += (2.0 * intersection + smooth) / (union + smooth)
    return 1.0 - jnp.mean(dice) / num_classes


if __name__ == "__main__":
    key = jax.random.PRNGKey(0)
    k1, k2 = jax.random.split(key)

    N, C, H, W = 2, 4, 16, 16
    pred = jax.random.normal(k1, (N, C, H, W), dtype=jnp.float32)
    target = jax.random.randint(k2, (N, H, W), 0, C, dtype=jnp.int32)

    loss = jax.jit(dice_loss)(pred, target)
    jax.block_until_ready(loss)

    ref = _dice_loss_ref(pred, target)
    np.testing.assert_allclose(np.asarray(loss), np.asarray(ref),
                               rtol=1e-5, atol=1e-6)

    print("KERNEL_OK")
</pallas_src>

<mosaic_0001>
module attributes {stable_mosaic.version = 11 : i64} {
  func.func @_dice_stats_kernel(%arg0: i32, %arg1: i32, %arg2: memref<1x4x2x128xf32, #tpu.memory_space<vmem>>, %arg3: memref<1x1x2x128xi8, #tpu.memory_space<vmem>>, %arg4: memref<1x1x12xf32, #tpu.memory_space<vmem>>, %arg5: memref<1x4x128xf32, #tpu.memory_space<vmem>>, %arg6: memref<1x4x128xf32, #tpu.memory_space<vmem>>, %arg7: memref<1x4x128xf32, #tpu.memory_space<vmem>>) attributes {dimension_semantics = [#tpu.dimension_semantics<parallel>, #tpu.dimension_semantics<arbitrary>], iteration_bounds = array<i64: 2, 1>, scalar_prefetch = 0 : i64, scratch_operands = 3 : i64, tpu.core_type = #tpu.core_type<tc>, window_params = [{transform_indices = @transform_0, window_bounds = array<i64: 1, 4, 2, 128>}, {transform_indices = @transform_1, window_bounds = array<i64: 1, 1, 2, 128>}, {transform_indices = @transform_2, window_bounds = array<i64: 1, 1, 12>}]} {
    %c0_i32 = arith.constant 0 : i32
    %0 = arith.cmpi eq, %arg1, %c0_i32 : i32
    %1 = arith.extui %0 : i1 to i32
    %c0_i32_0 = arith.constant 0 : i32
    %2 = arith.cmpi ne, %1, %c0_i32_0 : i32
    scf.if %2 {
      %cst_35 = arith.constant 0.000000e+00 : f32
      %39 = vector.broadcast %cst_35 : f32 to vector<1x4x128xf32>
      %c0_36 = arith.constant 0 : index
      %c0_37 = arith.constant 0 : index
      %c0_38 = arith.constant 0 : index
      %40 = vector.load %arg5[%c0_36, %c0_37, %c0_38] : memref<1x4x128xf32, #tpu.memory_space<vmem>>, vector<1x4x128xf32>
      tpu.vector_store %arg5[%c0_36, %c0_37, %c0_38], %39 {strides = array<i32>} : memref<1x4x128xf32, #tpu.memory_space<vmem>>, vector<1x4x128xf32>,
      %cst_39 = arith.constant 0.000000e+00 : f32
      %41 = vector.broadcast %cst_39 : f32 to vector<1x4x128xf32>
      %c0_40 = arith.constant 0 : index
      %c0_41 = arith.constant 0 : index
      %c0_42 = arith.constant 0 : index
      %42 = vector.load %arg6[%c0_40, %c0_41, %c0_42] : memref<1x4x128xf32, #tpu.memory_space<vmem>>, vector<1x4x128xf32>
      tpu.vector_store %arg6[%c0_40, %c0_41, %c0_42], %41 {strides = array<i32>} : memref<1x4x128xf32, #tpu.memory_space<vmem>>, vector<1x4x128xf32>,
      %cst_43 = arith.constant 0.000000e+00 : f32
      %43 = vector.broadcast %cst_43 : f32 to vector<1x4x128xf32>
      %c0_44 = arith.constant 0 : index
      %c0_45 = arith.constant 0 : index
      %c0_46 = arith.constant 0 : index
      %44 = vector.load %arg7[%c0_44, %c0_45, %c0_46] : memref<1x4x128xf32, #tpu.memory_space<vmem>>, vector<1x4x128xf32>
      tpu.vector_store %arg7[%c0_44, %c0_45, %c0_46], %43 {strides = array<i32>} : memref<1x4x128xf32, #tpu.memory_space<vmem>>, vector<1x4x128xf32>,
    } else {
    }
    %c0 = arith.constant 0 : index
    %c0_1 = arith.constant 0 : index
    %c0_2 = arith.constant 0 : index
    %c0_3 = arith.constant 0 : index
    %3 = vector.load %arg2[%c0, %c0_1, %c0_2, %c0_3] : memref<1x4x2x128xf32, #tpu.memory_space<vmem>>, vector<1x4x2x128xf32>
    %cst = arith.constant dense<0xFF800000> : vector<1x2x128xf32>
    %4 = vector.multi_reduction <maximumf>, %3, %cst [1] : vector<1x4x2x128xf32> to vector<1x2x128xf32>
    %5 = vector.shape_cast %4 : vector<1x2x128xf32> to vector<1x1x2x128xf32>
    %6 = vector.broadcast %5 : vector<1x1x2x128xf32> to vector<1x4x2x128xf32>
    %7 = arith.subf %3, %6 : vector<1x4x2x128xf32>
    %8 = math.exp %7 : vector<1x4x2x128xf32>
    %cst_4 = arith.constant dense<0.000000e+00> : vector<1x2x128xf32>
    %9 = vector.multi_reduction <add>, %8, %cst_4 [1] : vector<1x4x2x128xf32> to vector<1x2x128xf32>
    %10 = vector.shape_cast %9 : vector<1x2x128xf32> to vector<1x1x2x128xf32>
    %11 = tpu.reciprocal %10 : vector<1x1x2x128xf32> -> vector<1x1x2x128xf32>
    %12 = vector.broadcast %11 : vector<1x1x2x128xf32> to vector<1x4x2x128xf32>
    %13 = arith.mulf %8, %12 : vector<1x4x2x128xf32>
    %c0_5 = arith.constant 0 : index
    %c0_6 = arith.constant 0 : index
    %c0_7 = arith.constant 0 : index
    %c0_8 = arith.constant 0 : index
    %14 = vector.load %arg3[%c0_5, %c0_6, %c0_7, %c0_8] : memref<1x1x2x128xi8, #tpu.memory_space<vmem>>, vector<1x1x2x128xi8>
    %15 = arith.extsi %14 : vector<1x1x2x128xi8> to vector<1x1x2x128xi32>
    %16 = tpu.iota {dimensions = array<i32: 1>} : vector<1x4x2x128xi32>
    %17 = vector.broadcast %15 : vector<1x1x2x128xi32> to vector<1x4x2x128xi32>
    %18 = arith.cmpi eq, %17, %16 : vector<1x4x2x128xi32>
    %cst_9 = arith.constant 0.000000e+00 : f32
    %19 = vector.broadcast %cst_9 : f32 to vector<1x4x2x128xf32>
    %20 = arith.select %18, %13, %19 : vector<1x4x2x128xi1>, vector<1x4x2x128xf32>
    %cst_10 = arith.constant 1.000000e+00 : f32
    %cst_11 = arith.constant 0.000000e+00 : f32
    %21 = vector.broadcast %cst_10 : f32 to vector<1x4x2x128xf32>
    %22 = vector.broadcast %cst_11 : f32 to vector<1x4x2x128xf32>
    %23 = arith.select %18, %21, %22 : vector<1x4x2x128xi1>, vector<1x4x2x128xf32>
    %c0_12 = arith.constant 0 : index
    %c0_13 = arith.constant 0 : index
    %c0_14 = arith.constant 0 : index
    %24 = vector.load %arg5[%c0_12, %c0_13, %c0_14] : memref<1x4x128xf32, #tpu.memory_space<vmem>>, vector<1x4x128xf32>
    %cst_15 = arith.constant dense<0.000000e+00> : vector<1x4x128xf32>
    %25 = vector.multi_reduction <add>, %20, %cst_15 [2] : vector<1x4x2x128xf32> to vector<1x4x128xf32>
    %26 = arith.addf %24, %25 : vector<1x4x128xf32>
    %c0_16 = arith.constant 0 : index
    %c0_17 = arith.constant 0 : index
    %c0_18 = arith.constant 0 : index
    %27 = vector.load %arg5[%c0_16, %c0_17, %c0_18] : memref<1x4x128xf32, #tpu.memory_space<vmem>>, vector<1x4x128xf32>
    tpu.vector_store %arg5[%c0_16, %c0_17, %c0_18], %26 {strides = array<i32>} : memref<1x4x128xf32, #tpu.memory_space<vmem>>, vector<1x4x128xf32>,
    %c0_19 = arith.constant 0 : index
    %c0_20 = arith.constant 0 : index
    %c0_21 = arith.constant 0 : index
    %28 = vector.load %arg6[%c0_19, %c0_20, %c0_21] : memref<1x4x128xf32, #tpu.memory_space<vmem>>, vector<1x4x128xf32>
    %cst_22 = arith.constant dense<0.000000e+00> : vector<1x4x128xf32>
    %29 = vector.multi_reduction <add>, %13, %cst_22 [2] : vector<1x4x2x128xf32> to vector<1x4x128xf32>
    %30 = arith.addf %28, %29 : vector<1x4x128xf32>
    %c0_23 = arith.constant 0 : index
    %c0_24 = arith.constant 0 : index
    %c0_25 = arith.constant 0 : index
    %31 = vector.load %arg6[%c0_23, %c0_24, %c0_25] : memref<1x4x128xf32, #tpu.memory_space<vmem>>, vector<1x4x128xf32>
    tpu.vector_store %arg6[%c0_23, %c0_24, %c0_25], %30 {strides = array<i32>} : memref<1x4x128xf32, #tpu.memory_space<vmem>>, vector<1x4x128xf32>,
    %c0_26 = arith.constant 0 : index
    %c0_27 = arith.constant 0 : index
    %c0_28 = arith.constant 0 : index
    %32 = vector.load %arg7[%c0_26, %c0_27, %c0_28] : memref<1x4x128xf32, #tpu.memory_space<vmem>>, vector<1x4x128xf32>
    %cst_29 = arith.constant dense<0.000000e+00> : vector<1x4x128xf32>
    %33 = vector.multi_reduction <add>, %23, %cst_29 [2] : vector<1x4x2x128xf32> to vector<1x4x128xf32>
    %34 = arith.addf %32, %33 : vector<1x4x128xf32>
    %c0_30 = arith.constant 0 : index
    %c0_31 = arith.constant 0 : index
    %c0_32 = arith.constant 0 : index
    %35 = vector.load %arg7[%c0_30, %c0_31, %c0_32] : memref<1x4x128xf32, #tpu.memory_space<vmem>>, vector<1x4x128xf32>
    tpu.vector_store %arg7[%c0_30, %c0_31, %c0_32], %34 {strides = array<i32>} : memref<1x4x128xf32, #tpu.memory_space<vmem>>, vector<1x4x128xf32>,
    %c0_i32_33 = arith.constant 0 : i32
    %36 = arith.cmpi eq, %arg1, %c0_i32_33 : i32
    %37 = arith.extui %36 : i1 to i32
    %c0_i32_34 = arith.constant 0 : i32
    %38 = arith.cmpi ne, %37, %c0_i32_34 : i32
    scf.if %38 {
      %c0_35 = arith.constant 0 : index
      %c0_36 = arith.constant 0 : index
      %c0_37 = arith.constant 0 : index
      %39 = vector.load %arg5[%c0_35, %c0_36, %c0_37] : memref<1x4x128xf32, #tpu.memory_space<vmem>>, vector<1x4x128xf32>
      %cst_38 = arith.constant dense<0.000000e+00> : vector<1x4xf32>
      %40 = vector.multi_reduction <add>, %39, %cst_38 [2] : vector<1x4x128xf32> to vector<1x4xf32>
      %c0_39 = arith.constant 0 : index
      %c0_40 = arith.constant 0 : index
      %c0_41 = arith.constant 0 : index
      %41 = vector.load %arg4[%c0_39, %c0_40, %c0_41] : memref<1x1x12xf32, #tpu.memory_space<vmem>>, vector<1x1x4xf32>
      %42 = vector.shape_cast %41 : vector<1x1x4xf32> to vector<1x4xf32>
      %43 = vector.shape_cast %40 : vector<1x4xf32> to vector<1x1x4xf32>
      tpu.vector_store %arg4[%c0_39, %c0_40, %c0_41], %43 {strides = array<i32>} : memref<1x1x12xf32, #tpu.memory_space<vmem>>, vector<1x1x4xf32>,
      %c0_42 = arith.constant 0 : index
      %c0_43 = arith.constant 0 : index
      %c0_44 = arith.constant 0 : index
      %44 = vector.load %arg6[%c0_42, %c0_43, %c0_44] : memref<1x4x128xf32, #tpu.memory_space<vmem>>, vector<1x4x128xf32>
      %cst_45 = arith.constant dense<0.000000e+00> : vector<1x4xf32>
      %45 = vector.multi_reduction <add>, %44, %cst_45 [2] : vector<1x4x128xf32> to vector<1x4xf32>
      %c0_46 = arith.constant 0 : index
      %c0_47 = arith.constant 0 : index
      %c4 = arith.constant 4 : index
      %46 = vector.load %arg4[%c0_46, %c0_47, %c4] : memref<1x1x12xf32, #tpu.memory_space<vmem>>, vector<1x1x4xf32>
      %47 = vector.shape_cast %46 : vector<1x1x4xf32> to vector<1x4xf32>
      %48 = vector.shape_cast %45 : vector<1x4xf32> to vector<1x1x4xf32>
      tpu.vector_store %arg4[%c0_46, %c0_47, %c4], %48 {strides = array<i32>} : memref<1x1x12xf32, #tpu.memory_space<vmem>>, vector<1x1x4xf32>,
      %c0_48 = arith.constant 0 : index
      %c0_49 = arith.constant 0 : index
      %c0_50 = arith.constant 0 : index
      %49 = vector.load %arg7[%c0_48, %c0_49, %c0_50] : memref<1x4x128xf32, #tpu.memory_space<vmem>>, vector<1x4x128xf32>
      %cst_51 = arith.constant dense<0.000000e+00> : vector<1x4xf32>
      %50 = vector.multi_reduction <add>, %49, %cst_51 [2] : vector<1x4x128xf32> to vector<1x4xf32>
      %c0_52 = arith.constant 0 : index
      %c0_53 = arith.constant 0 : index
      %c8 = arith.constant 8 : index
      %51 = vector.load %arg4[%c0_52, %c0_53, %c8] : memref<1x1x12xf32, #tpu.memory_space<vmem>>, vector<1x1x4xf32>
      %52 = vector.shape_cast %51 : vector<1x1x4xf32> to vector<1x4xf32>
      %53 = vector.shape_cast %50 : vector<1x4xf32> to vector<1x1x4xf32>
      tpu.vector_store %arg4[%c0_52, %c0_53, %c8], %53 {strides = array<i32>} : memref<1x1x12xf32, #tpu.memory_space<vmem>>, vector<1x1x4xf32>,
    } else {
    }
    return
  }
  func.func @transform_0(%arg0: i32, %arg1: i32) -> (i32, i32, i32, i32) {
    %c0_i32 = arith.constant 0 : i32
    %c0_i32_0 = arith.constant 0 : i32
    %c0_i32_1 = arith.constant 0 : i32
    return %arg0, %c0_i32, %arg1, %c0_i32_0 : i32, i32, i32, i32
  }
  func.func @transform_1(%arg0: i32, %arg1: i32) -> (i32, i32, i32, i32) {
    %c0_i32 = arith.constant 0 : i32
    %c0_i32_0 = arith.constant 0 : i32
    %c0_i32_1 = arith.constant 0 : i32
    return %arg0, %c0_i32, %arg1, %c0_i32_0 : i32, i32, i32, i32
  }
  func.func @transform_2(%arg0: i32, %arg1: i32) -> (i32, i32, i32) {
    %c0_i32 = arith.constant 0 : i32
    %c0_i32_0 = arith.constant 0 : i32
    %c0_i32_1 = arith.constant 0 : i32
    return %arg0, %c0_i32, %c0_i32_0 : i32, i32, i32
  }
}

</mosaic_0001>

<llo_original>
// kernel: dice_loss.1
$region0: #{dice_loss.1}
  #allocation0 [shape = 'u32[]', space=smem, size = 0x4, offset = 0x4, fixed_abs, tag = 'smem constant byte address 0x4 - core index']
  #allocation1 [shape = 'u32[144,128]{1,0:T(1,128)}', space=vmem, size = 0x12000, scoped, tag = 'internal scratch']
  #allocation2 [shape = 'f32[1,4,128]{2,1,0:T(4,128)}', space=vmem, size = 0x800, scoped, tag = 'scratch operand']
  #allocation3 [shape = 'f32[1,4,128]{2,1,0:T(4,128)}', space=vmem, size = 0x800, scoped, tag = 'scratch operand']
  #allocation4 [shape = 'f32[1,4,128]{2,1,0:T(4,128)}', space=vmem, size = 0x800, scoped, tag = 'scratch operand']
  %s0 = inlined_call_operand.vmem [shape: f32[2,4,2,128], index: 0, kind: input, shape index: {}]
  %s1 = inlined_call_operand.vmem [shape: s8[2,1,2,128], index: 1, kind: input, shape index: {}]
  %s2 = inlined_call_operand.vmem [shape: f32[2,1,12], index: 2, kind: output, shape index: {}]
  %s3 = sld [smem:[#allocation0]]
  $region49: #{dice_loss.1} parent=0
    _
  %s5 = ssub.s32 1, %s3
  %s6 = scalar_select 0, %s5, %s3
  loop: start=0, step=1, limit=4
  $region2: #{dice_loss.1} parent=0 // loop_pre_header
    _
  $region3: #{dice_loss.1} parent=0 // loop_header
    %s8 = sphi 0, %s12
    %p9 = scmp.ge.s32.totalorder %s8, 4
    %s15 = sphi 0, %s27
    %s16 = sphi 0, %s23
    %s17 = sphi 0, %s15
    %s18 = sphi 0, %s16
    %s19 = sphi 0, %s17
    %s20 = sphi 0, %s18
    %s32 = sphi 0, %s34
    %s35 = sphi 0, %s32
    %s36 = sphi 0, %s35
    %s52 = sphi 0, %s36
    %s60 = sphi 0, %s62
    %s63 = sphi 0, %s60
    %s64 = sphi 0, %s63
    %s80 = sphi 0, %s64
    %s86 = sphi 0, %s88
    %s89 = sphi 0, %s86
    %s90 = sphi 0, %s89
    %s106 = sphi 0, %s90
  $region4: #{dice_loss.1} parent=0 // loop_header_branch
    %11 = sbr.rel (%p9) target = $region8
  $region5: #{dice_loss.1} parent=0 // loop_body
    %s13 = ssub.s32 %s8, 1
    %s14 = ssub.s32 %s8, 2
    %s21 = sadd.s32 1, %s16
    %p22 = scmp.ge.s32.totalorder %s21, 1
    %s23 = scalar_select %p22, 0, %s21
    %s24 = sadd.s32 1, %s15
    %s25 = scalar_select %p22, %s24, %s15
    %p26 = scmp.ge.s32.totalorder %s25, 2
    %s27 = scalar_select %p26, 0, %s25
    %s28 = ssub.s32 %s15, %s27
    %s29 = ssub.s32 %s16, %s23
    %s30 = sor.u32 %s28, %s29
    %p31 = scmp.eq.s32.totalorder %s30, 0
    %s33 = sadd.s32 %s32, 1
    %s34 = scalar_select %p31, %s32, %s33
    %p37 = pneg %p31
    %p38 = scmp.eq.s32.totalorder %s8, 1
    %p39 = por %p37, %p38
    %p40 = scmp.ne.s32.totalorder %s32, %s35
    %p41 = scmp.eq.s32.totalorder %s8, 0
    %p42 = por %p40, %p41
    %p43 = scmp.ne.s32.totalorder %s32, %s35
    %p44 = scmp.eq.s32.totalorder %s13, 1
    %p45 = por %p43, %p44
    %p46 = scmp.ne.s32.totalorder %s35, %s36
    %p47 = scmp.eq.s32.totalorder %s13, 0
    %p48 = por %p46, %p47
    %p49 = scmp.ne.s32.totalorder %s35, %s36
    %p50 = scmp.eq.s32.totalorder %s14, 1
    %p51 = por %p49, %p50
    %p53 = scmp.ne.s32.totalorder %s36, %s52
    %p54 = scmp.eq.s32.totalorder %s14, 0
    %p55 = por %p53, %p54
    %s56 = ssub.s32 %s15, %s27
    %s57 = ssub.s32 %s16, %s23
    %s58 = sor.u32 %s56, %s57
    %p59 = scmp.eq.s32.totalorder %s58, 0
    %s61 = sadd.s32 %s60, 1
    %s62 = scalar_select %p59, %s60, %s61
    %p65 = pneg %p59
    %p66 = scmp.eq.s32.totalorder %s8, 1
    %p67 = por %p65, %p66
    %p68 = scmp.ne.s32.totalorder %s60, %s63
    %p69 = scmp.eq.s32.totalorder %s8, 0
    %p70 = por %p68, %p69
    %p71 = scmp.ne.s32.totalorder %s60, %s63
    %p72 = scmp.eq.s32.totalorder %s13, 1
    %p73 = por %p71, %p72
    %p74 = scmp.ne.s32.totalorder %s63, %s64
    %p75 = scmp.eq.s32.totalorder %s13, 0
    %p76 = por %p74, %p75
    %p77 = scmp.ne.s32.totalorder %s63, %s64
    %p78 = scmp.eq.s32.totalorder %s14, 1
    %p79 = por %p77, %p78
    %p81 = scmp.ne.s32.totalorder %s64, %s80
    %p82 = scmp.eq.s32.totalorder %s14, 0
    %p83 = por %p81, %p82
    %s84 = ssub.s32 %s15, %s27
    %p85 = scmp.eq.s32.totalorder %s84, 0
    %s87 = sadd.s32 %s86, 1
    %s88 = scalar_select %p85, %s86, %s87
    %p91 = pneg %p85
    %p92 = scmp.eq.s32.totalorder %s8, 1
    %p93 = por %p91, %p92
    %p94 = scmp.ne.s32.totalorder %s86, %s89
    %p95 = scmp.eq.s32.totalorder %s8, 0
    %p96 = por %p94, %p95
    %p97 = scmp.ne.s32.totalorder %s86, %s89
    %p98 = scmp.eq.s32.totalorder %s13, 1
    %p99 = por %p97, %p98
    %p100 = scmp.ne.s32.totalorder %s89, %s90
    %p101 = scmp.eq.s32.totalorder %s13, 0
    %p102 = por %p100, %p101
    %p103 = scmp.ne.s32.totalorder %s89, %s90
    %p104 = scmp.eq.s32.totalorder %s14, 1
    %p105 = por %p103, %p104
    %p107 = scmp.ne.s32.totalorder %s90, %s106
    %p108 = scmp.eq.s32.totalorder %s14, 0
    %p109 = por %p107, %p108
    %p110 = scmp.le.s32.totalorder 1, %s8
    %p111 = scmp.lt.s32.totalorder %s8, 3
    %p112 = pnand %p110, %p111
    %p113 = pneg %p112
    // Predicated region
    $region9: #{dice_loss.1} parent=5 // pred_check
      _
    $region10: #{dice_loss.1} parent=5 // pred_check_branch
      %115 = sbr.rel (%p112) target = $region12
    $region11: #{dice_loss.1} parent=5 // pred_region
      %s116 = ssub.s32 %s8, 1
    $region12: #{dice_loss.1} parent=5 // pred_fallthru
      _
    %p117 = scmp.lt.s32.totalorder %s8, 2
    // Predicated region
    $region13: #{dice_loss.1} parent=5 // pred_check
      %p118 = pneg %p117
    $region14: #{dice_loss.1} parent=5 // pred_check_branch
      %120 = sbr.rel (%p118) target = $region16
    $region15: #{dice_loss.1} parent=5 // pred_region
      // Predicated region
      $region17: #{dice_loss.1} parent=15 // pred_check
        %p121 = pneg %p42
      $region18: #{dice_loss.1} parent=15 // pred_check_branch
        %123 = sbr.rel (%p121) target = $region20
      $region19: #{dice_loss.1} parent=15 // pred_region
        %p124 = scmp.lt.s32.totalorder %s15, 1
        %s125 = scalar_select %p124, %s15, 1
        %p126 = scmp.lt.s32.totalorder %s16, 0
        %s127 = scalar_select %p126, %s16, 0
        %s128 = smul.addr %s125, 4
        %s129 = sadd.s32 %s127, %s128
        %s130 = smul.addr %s129, 2
        %s131 = scalar_lea.vmem %s0, %s130
      $region20: #{dice_loss.1} parent=15 // pred_fallthru
        _
      // Predicated region
      $region21: #{dice_loss.1} parent=15 // pred_check
        %p132 = pneg %p70
      $region22: #{dice_loss.1} parent=15 // pred_check_branch
        %134 = sbr.rel (%p132) target = $region24
      $region23: #{dice_loss.1} parent=15 // pred_region
        %p135 = scmp.lt.s32.totalorder %s15, 1
        %s136 = scalar_select %p135, %s15, 1
        %p137 = scmp.lt.s32.totalorder %s16, 0
        %s138 = scalar_select %p137, %s16, 0
        %s139 = sadd.s32 %s138, %s136
        %s140 = scalar_lea.vmem %s1, %s139
      $region24: #{dice_loss.1} parent=15 // pred_fallthru
        _
    $region16: #{dice_loss.1} parent=5 // pred_fallthru
      _
    %p141 = scmp.le.s32.totalorder 1, %s8
    %p142 = scmp.lt.s32.totalorder %s8, 3
    %p143 = pnand %p141, %p142
    %p144 = pneg %p143
    // Predicated region
    $region25: #{dice_loss.1} parent=5 // pred_check
      _
    $region26: #{dice_loss.1} parent=5 // pred_check_branch
      %146 = sbr.rel (%p143) target = $region28
    $region27: #{dice_loss.1} parent=5 // pred_region
      %s147 = ssub.s32 %s8, 1
      %p148 = scmp.lt.s32.totalorder %s17, 1
      %s149 = scalar_select %p148, %s17, 1
      %p150 = scmp.lt.s32.totalorder %s18, 0
      %s151 = scalar_select %p150, %s18, 0
      %s152 = smul.addr %s149, 4
      %s153 = sadd.s32 %s151, %s152
      %s154 = smul.addr %s153, 2
      %s155 = scalar_lea.vmem %s0, %s154
      %p156 = pneg %p48
      %p157 = pneg %p45
      %p158 = scmp.lt.s32.totalorder %s17, 1
      %s159 = scalar_select %p158, %s17, 1
      %p160 = scmp.lt.s32.totalorder %s18, 0
      %s161 = scalar_select %p160, %s18, 0
      %s162 = sadd.s32 %s161, %s159
      %s163 = scalar_lea.vmem %s1, %s162
      %p164 = pneg %p76
      %p165 = pneg %p73
      %p166 = pneg %p102
      %p167 = pneg %p99
      %p168 = scmp.lt.s32.totalorder %s17, 1
      %s169 = scalar_select %p168, %s17, 1
      %s170 = scalar_lea.vmem %s2, %s169
      %p171 = scmp.lt.s32.totalorder %s17, 1
      %s172 = scalar_select %p171, %s17, 1
      %p173 = scmp.lt.s32.totalorder %s18, 0
      %s174 = scalar_select %p173, %s18, 0
      %s175 = smul.addr %s172, 4
      %s176 = sadd.s32 %s174, %s175
      %s177 = smul.addr %s176, 2
      %s178 = scalar_lea.vmem %s0, %s177
      %p179 = scmp.lt.s32.totalorder %s17, 1
      %s180 = scalar_select %p179, %s17, 1
      %p181 = scmp.lt.s32.totalorder %s18, 0
      %s182 = scalar_select %p181, %s18, 0
      %s183 = sadd.s32 %s182, %s180
      %s184 = scalar_lea.vmem %s1, %s183
      %p185 = scmp.lt.s32.totalorder %s17, 1
      %s186 = scalar_select %p185, %s17, 1
      %s187 = scalar_lea.vmem %s2, %s186
      %p188 = scmp.eq.s32.totalorder %s18, 0
      // Predicated region
      $region29: #{dice_loss.1} parent=27 // pred_check
        %p189 = pneg %p188
      $region30: #{dice_loss.1} parent=27 // pred_check_branch
        %191 = sbr.rel (%p189) target = $region32
      $region31: #{dice_loss.1} parent=27 // pred_region
        %192 = vst [vmem:[#allocation2] sm:$0xf] 0.0
        %193 = vst [vmem:[#allocation3] sm:$0xf] 0.0
        %194 = vst [vmem:[#allocation4] sm:$0xf] 0.0
      $region32: #{dice_loss.1} parent=27 // pred_fallthru
        _
      %v195 = vld [vmem:[%s178] sm:$0x3]
      %v196 = vld [vmem:[%s178 + $0x2] sm:$0x3]
      %v197 = vld [vmem:[%s178 + $0x4] sm:$0x3]
      %v198 = vld [vmem:[%s178 + $0x6] sm:$0x3]
      %vm199 = vcmask 1041408
      %v200 = vsel %vm199, %v195, -inf
      %v201 = vsel %vm199, %v196, -inf
      %v202 = vsel %vm199, %v197, -inf
      %v203 = vsel %vm199, %v198, -inf
      %v204 = vmax.f32 %v200, %v201
      %v205 = vmax.f32 %v202, %v203
      %v206 = vmax.f32 %v204, %v205
      %v207 = vsub.f32 %v195, %v206
      %v208 = vsub.f32 %v196, %v206
      %v209 = vsub.f32 %v197, %v206
      %v210 = vsub.f32 %v198, %v206
      %v211 = vmul.f32 %v207, 1.442695
      %v212 = vpow.pop %v211
      %v213 = vmul.f32 %v208, 1.442695
      %v214 = vpow.pop %v213
      %v215 = vmul.f32 %v209, 1.442695
      %v216 = vpow.pop %v215
      %v217 = vmul.f32 %v210, 1.442695
      %v218 = vpow.pop %v217
      %v219 = vsel %vm199, %v212, 0.0
      %v220 = vsel %vm199, %v214, 0.0
      %v221 = vadd.f32 %v219, %v220
      %v222 = vsel %vm199, %v216, 0.0
      %v223 = vadd.f32 %v221, %v222
      %v224 = vsel %vm199, %v218, 0.0
      %v225 = vadd.f32 %v223, %v224
      %v226 = vrcp.pop %v225
      %v227 = vmul.f32 %v212, %v226
      %v228 = vmul.f32 %v214, %v226
      %v229 = vmul.f32 %v216, %v226
      %v230 = vmul.f32 %v218, %v226
      %v231 = vld [vmem:[%s184] sm:$0x1]
      %v232 = vunpack.c.0.s8 %v231
      %vm233 = vcmp.eq.s32.totalorder %v232, 0
      %vm234 = vcmp.eq.s32.totalorder %v232, 1
      %vm235 = vcmp.eq.s32.totalorder %v232, 2
      %vm236 = vcmp.eq.s32.totalorder %v232, 3
      %v237 = vsel %vm233, %v227, 0.0
      %v238 = vsel %vm234, %v228, 0.0
      %v239 = vsel %vm235, %v229, 0.0
      %v240 = vsel %vm236, %v230, 0.0
      %v241 = vsel %vm233, 1.0, 0.0
      %v242 = vsel %vm234, 1.0, 0.0
      %v243 = vsel %vm235, 1.0, 0.0
      %v244 = vsel %vm236, 1.0, 0.0
      %v245 = vld [vmem:[#allocation2] sm:$0xf]
      %v246 = vsel %vm199, %v237, 0.0
      %v247 = vrot.slane %v246, 4
      %v248 = vadd.f32 %v246, %v247
      %v249 = vrot.slane %v248, 2
      %v250 = vadd.f32 %v248, %v249
      %v251 = vrot.slane %v250, 1
      %v252 = vadd.f32 %v250, %v251
      %v253 = vsel %vm199, %v238, 0.0
      %v254 = vrot.slane %v253, 4
      %v255 = vadd.f32 %v253, %v254
      %v256 = vrot.slane %v255, 2
      %v257 = vadd.f32 %v255, %v256
      %v258 = vrot.slane %v257, 1
      %v259 = vadd.f32 %v257, %v258
      %v260 = vsel %vm199, %v239, 0.0
      %v261 = vrot.slane %v260, 4
      %v262 = vadd.f32 %v260, %v261
      %v263 = vrot.slane %v262, 2
      %v264 = vadd.f32 %v262, %v263
      %v265 = vrot.slane %v264, 1
      %v266 = vadd.f32 %v264, %v265
      %v267 = vsel %vm199, %v240, 0.0
      %v268 = vrot.slane %v267, 4
      %v269 = vadd.f32 %v267, %v268
      %v270 = vrot.slane %v269, 2
      %v271 = vadd.f32 %v269, %v270
      %v272 = vrot.slane %v271, 1
      %v273 = vadd.f32 %v271, %v272
      %vm278 = vcmask 1041409
      %v279 = vsel %vm278, %v259, %v252
      %vm280 = vcmask 1042434
      %v281 = vsel %vm280, %v266, %v279
      %vm282 = vcmask 1043459
      %v283 = vsel %vm282, %v273, %v281
      %v285 = vadd.f32 %v245, %v283
      %286 = vst [vmem:[#allocation2] sm:$0xf] %v285
      %v287 = vld [vmem:[#allocation3] sm:$0xf]
      %v288 = vsel %vm199, %v227, 0.0
      %v289 = vrot.slane %v288, 4
      %v290 = vadd.f32 %v288, %v289
      %v291 = vrot.slane %v290, 2
      %v292 = vadd.f32 %v290, %v291
      %v293 = vrot.slane %v292, 1
      %v294 = vadd.f32 %v292, %v293
      %v295 = vsel %vm199, %v228, 0.0
      %v296 = vrot.slane %v295, 4
      %v297 = vadd.f32 %v295, %v296
      %v298 = vrot.slane %v297, 2
      %v299 = vadd.f32 %v297, %v298
      %v300 = vrot.slane %v299, 1
      %v301 = vadd.f32 %v299, %v300
      %v302 = vsel %vm199, %v229, 0.0
      %v303 = vrot.slane %v302, 4
      %v304 = vadd.f32 %v302, %v303
      %v305 = vrot.slane %v304, 2
      %v306 = vadd.f32 %v304, %v305
      %v307 = vrot.slane %v306, 1
      %v308 = vadd.f32 %v306, %v307
      %v309 = vsel %vm199, %v230, 0.0
      %v310 = vrot.slane %v309, 4
      %v311 = vadd.f32 %v309, %v310
      %v312 = vrot.slane %v311, 2
      %v313 = vadd.f32 %v311, %v312
      %v314 = vrot.slane %v313, 1
      %v315 = vadd.f32 %v313, %v314
      %v320 = vsel %vm278, %v301, %v294
      %v321 = vsel %vm280, %v308, %v320
      %v322 = vsel %vm282, %v315, %v321
      %v324 = vadd.f32 %v287, %v322
      %325 = vst [vmem:[#allocation3] sm:$0xf] %v324
      %v326 = vld [vmem:[#allocation4] sm:$0xf]
      %v327 = vsel %vm199, %v241, 0.0
      %v328 = vrot.slane %v327, 4
      %v329 = vadd.f32 %v327, %v328
      %v330 = vrot.slane %v329, 2
      %v331 = vadd.f32 %v329, %v330
      %v332 = vrot.slane %v331, 1
      %v333 = vadd.f32 %v331, %v332
      %v334 = vsel %vm199, %v242, 0.0
      %v335 = vrot.slane %v334, 4
      %v336 = vadd.f32 %v334, %v335
      %v337 = vrot.slane %v336, 2
      %v338 = vadd.f32 %v336, %v337
      %v339 = vrot.slane %v338, 1
      %v340 = vadd.f32 %v338, %v339
      %v341 = vsel %vm199, %v243, 0.0
      %v342 = vrot.slane %v341, 4
      %v343 = vadd.f32 %v341, %v342
      %v344 = vrot.slane %v343, 2
      %v345 = vadd.f32 %v343, %v344
      %v346 = vrot.slane %v345, 1
      %v347 = vadd.f32 %v345, %v346
      %v348 = vsel %vm199, %v244, 0.0
      %v349 = vrot.slane %v348, 4
      %v350 = vadd.f32 %v348, %v349
      %v351 = vrot.slane %v350, 2
      %v352 = vadd.f32 %v350, %v351
      %v353 = vrot.slane %v352, 1
      %v354 = vadd.f32 %v352, %v353
      %v359 = vsel %vm278, %v340, %v333
      %v360 = vsel %vm280, %v347, %v359
      %v361 = vsel %vm282, %v354, %v360
      %v363 = vadd.f32 %v326, %v361
      %364 = vst [vmem:[#allocation4] sm:$0xf] %v363
      // Predicated region
      $region33: #{dice_loss.1} parent=27 // pred_check
        %p365 = pneg %p188
      $region34: #{dice_loss.1} parent=27 // pred_check_branch
        %367 = sbr.rel (%p365) target = $region36
      $region35: #{dice_loss.1} parent=27 // pred_region
        %v368 = vld [vmem:[#allocation2] sm:$0xf]
        %vm369 = vcmask 1043456
        %v370 = vsel %vm369, %v368, 0.0
        %371 = vadd.xlane.f32.xlu0 %v370
        %v372 = vpop.xlane.xlu0 %371
        %v374 = vlaneseq
        %v375 = vand.u32 %v374, 127
        %v376 = vlaneseq
        %v377 = vshrl.u32 %v376, 7
        %v378 = vsub.s32 %v375, %v377
        %v379 = vrot.slane %v372, %v378
        %vm381 = vcmask 24576
        %382 = vst.msk [vmem:[%s187] sm:$0x1] %vm381, %v379
        %v383 = vld [vmem:[#allocation3] sm:$0xf]
        %v384 = vsel %vm369, %v383, 0.0
        %385 = vadd.xlane.f32.xlu0 %v384
        %v386 = vpop.xlane.xlu0 %385
        %v388 = vadd.s32 %v375, 4294967292
        %v389 = vlaneseq
        %v390 = vshrl.u32 %v389, 7
        %v391 = vsub.s32 %v388, %v390
        %v392 = vrot.slane %v386, %v391
        %vm394 = vcmask 57376
        %395 = vst.msk [vmem:[%s187] sm:$0x1] %vm394, %v392
        %v396 = vld [vmem:[#allocation4] sm:$0xf]
        %v397 = vsel %vm369, %v396, 0.0
        %398 = vadd.xlane.f32.xlu0 %v397
        %v399 = vpop.xlane.xlu0 %398
        %v401 = vadd.s32 %v375, 4294967288
        %v402 = vlaneseq
        %v403 = vshrl.u32 %v402, 7
        %v404 = vsub.s32 %v401, %v403
        %v405 = vrot.slane %v399, %v404
        %vm407 = vcmask 90176
        %408 = vst.msk [vmem:[%s187] sm:$0x1] %vm407, %v405
      $region36: #{dice_loss.1} parent=27 // pred_fallthru
        _
      %p409 = scmp.lt.s32.totalorder %s17, 1
      %s410 = scalar_select %p409, %s17, 1
      %s411 = scalar_lea.vmem %s2, %s410
      // Predicated region
      $region37: #{dice_loss.1} parent=27 // pred_check
        %p412 = pneg %p99
      $region38: #{dice_loss.1} parent=27 // pred_check_branch
        %414 = sbr.rel (%p412) target = $region40
      $region39: #{dice_loss.1} parent=27 // pred_region
        _
      $region40: #{dice_loss.1} parent=27 // pred_fallthru
        _
    $region28: #{dice_loss.1} parent=5 // pred_fallthru
      _
    %p415 = scmp.le.s32.totalorder 2, %s8
    // Predicated region
    $region41: #{dice_loss.1} parent=5 // pred_check
      %p416 = pneg %p415
    $region42: #{dice_loss.1} parent=5 // pred_check_branch
      %418 = sbr.rel (%p416) target = $region44
    $region43: #{dice_loss.1} parent=5 // pred_region
      %s419 = ssub.s32 %s8, 2
      // Predicated region
      $region45: #{dice_loss.1} parent=43 // pred_check
        %p420 = pneg %p105
      $region46: #{dice_loss.1} parent=43 // pred_check_branch
        %422 = sbr.rel (%p420) target = $region48
      $region47: #{dice_loss.1} parent=43 // pred_region
        %p423 = scmp.lt.s32.totalorder %s19, 1
        %s424 = scalar_select %p423, %s19, 1
        %s425 = scalar_lea.vmem %s2, %s424
      $region48: #{dice_loss.1} parent=43 // pred_fallthru
        _
    $region44: #{dice_loss.1} parent=5 // pred_fallthru
      _
  $region6: #{dice_loss.1} parent=0 // loop_footer
    %s12 = sadd.s32 1, %s8
  $region7: #{dice_loss.1} parent=0 // loop_footer_branch
    %7 = sbr.rel target = $region3
  $region8: #{dice_loss.1} parent=0 // loop_exit
    _

</llo_original>
